<compile_context>
chip_gen: v7x
topology: tpu7x:2x2x1
jax: 0.10.0
libtpu: 0.0.40
codegen_flags: <defaults>
</compile_context>

<pallas_src>
import jax
import jax.numpy as jnp
from jax.experimental import pallas as pl
from jax.experimental.pallas import tpu as pltpu


def _round_up(n, m):
    return ((n + m - 1) // m) * m


def fp_embedder_kernel(fp_ref, o_ref):
    # forward(data, perturb=None) == data['fp']  -> identity copy of the tile.
    o_ref[...] = fp_ref[...]


def fp_embedder(data, perturb=None, *, tb=512):
    """Pallas implementation of FPEmbedder.forward.

    data: dict with key 'fp' -> (batch, fp_dim) array.
    perturb: ignored (matches the PyTorch module, which never uses it).
    tb: batch tile (rows per grid step); large by default so the copy is
        memory-bandwidth bound rather than step-overhead bound.
    """
    fp = data["fp"]
    B, D = fp.shape

    # Batch tile: multiple of 8 (sublane granularity), capped at the padded
    # batch size.  No divisibility requirement on the caller's B.
    Bp8 = _round_up(max(B, 1), 8)
    tb = max(8, min(_round_up(tb, 8), Bp8))
    Bp = _round_up(Bp8, tb)

    fp_in = jnp.pad(fp, ((0, Bp - B), (0, 0))) if Bp != B else fp

    out = pl.pallas_call(
        fp_embedder_kernel,
        out_shape=jax.ShapeDtypeStruct((Bp, D), fp.dtype),
        grid_spec=pltpu.PrefetchScalarGridSpec(
            num_scalar_prefetch=0,
            grid=(Bp // tb,),
            # Feature dim kept whole => lane-dense, unmasked stores when
            # fp_dim is a multiple of 128; legal otherwise via full-dim rule.
            in_specs=[pl.BlockSpec((tb, D), lambda i: (i, 0))],
            out_specs=pl.BlockSpec((tb, D), lambda i: (i, 0)),
        ),
        compiler_params=pltpu.CompilerParams(
            dimension_semantics=("parallel",)),
    )(fp_in)

    return out[:B] if Bp != B else out


def fp_embedder_ref(data, perturb=None):
    """Pure-JAX reference (the module literally returns data['fp'])."""
    return data["fp"]


if __name__ == "__main__":
    key = jax.random.PRNGKey(0)

    # Small, module-consistent shapes: a binary molecular fingerprint matrix.
    B, FP_DIM = 8, 256  # fp_dim lane-dense (multiple of 128)
    k1, k2 = jax.random.split(key)
    fp = (jax.random.uniform(k1, (B, FP_DIM)) < 0.1).astype(jnp.float32)
    data = {"fp": fp}

    out = fp_embedder(data)
    out = jax.block_until_ready(out)
    assert out.shape == (B, FP_DIM)
    assert out.dtype == fp.dtype
    assert jnp.array_equal(out, fp_embedder_ref(data)), "mismatch vs reference"

    # Ragged / non-128 feature-dim path (padded batch + full-dim lane block).
    B2, FP_DIM2 = 6, 100
    fp2 = (jax.random.uniform(k2, (B2, FP_DIM2)) < 0.1).astype(jnp.float32)
    out2 = jax.block_until_ready(fp_embedder({"fp": fp2}))
    assert out2.shape == (B2, FP_DIM2)
    assert jnp.array_equal(out2, fp2), "mismatch vs reference (ragged case)"

    print("KERNEL_OK")
</pallas_src>

<mosaic_0001>
module attributes {stable_mosaic.version = 11 : i64} {
  func.func @fp_embedder_kernel(%arg0: i32, %arg1: memref<8x256xf32, #tpu.memory_space<vmem>>, %arg2: memref<8x256xf32, #tpu.memory_space<vmem>>) attributes {dimension_semantics = [#tpu.dimension_semantics<parallel>], iteration_bounds = array<i64: 1>, scalar_prefetch = 0 : i64, scratch_operands = 0 : i64, tpu.core_type = #tpu.core_type<tc>, window_params = [{transform_indices = @transform_0, window_bounds = array<i64: 8, 256>}, {transform_indices = @transform_1, window_bounds = array<i64: 8, 256>}]} {
    %c0 = arith.constant 0 : index
    %c0_0 = arith.constant 0 : index
    %0 = vector.load %arg1[%c0, %c0_0] : memref<8x256xf32, #tpu.memory_space<vmem>>, vector<8x256xf32>
    %c0_1 = arith.constant 0 : index
    %c0_2 = arith.constant 0 : index
    %1 = vector.load %arg2[%c0_1, %c0_2] : memref<8x256xf32, #tpu.memory_space<vmem>>, vector<8x256xf32>
    tpu.vector_store %arg2[%c0_1, %c0_2], %0 {strides = array<i32>} : memref<8x256xf32, #tpu.memory_space<vmem>>, vector<8x256xf32>,
    return
  }
  func.func @transform_0(%arg0: i32) -> (i32, i32) {
    %c0_i32 = arith.constant 0 : i32
    %c0_i32_0 = arith.constant 0 : i32
    return %arg0, %c0_i32 : i32, i32
  }
  func.func @transform_1(%arg0: i32) -> (i32, i32) {
    %c0_i32 = arith.constant 0 : i32
    %c0_i32_0 = arith.constant 0 : i32
    return %arg0, %c0_i32 : i32, i32
  }
}

</mosaic_0001>

<llo_original>
// kernel: tpu_custom_call.1
$region0: #{tpu_custom_call.1}
  #allocation0 [shape = 'u32[]', space=smem, size = 0x4, offset = 0x4, fixed_abs, tag = 'smem constant byte address 0x4 - core index']
  #allocation1 [shape = 'u32[144,128]{1,0:T(1,128)}', space=vmem, size = 0x12000, scoped, tag = 'internal scratch']
  %s0 = inlined_call_operand.hbm [shape: f32[8,256], index: 0, kind: input, shape index: {}]
  %s1 = inlined_call_operand.hbm [shape: f32[8,256], index: 1, kind: output, shape index: {}]
  %s2 = sld [smem:[#allocation0]]
  $region18: #{tpu_custom_call.1} parent=0
    _
  %s4 = ssub.s32 1, %s2
  %s5 = scalar_select 0, %s4, %s2
  $region1: #{tpu_custom_call.1} parent=0
    #allocation2 [shape = 'u8[8192]{0}', space=vmem, size = 0x2000, scoped, tag = 'input window, operand 0, single buffered']
    #allocation3 [shape = 's32[1]{0}', space=sflag, size = 0x4, scoped, tag = 'scoped memory for tpu_custom_call.1']
    #allocation4 [shape = 's32[1]{0}', space=sflag, size = 0x4, scoped, tag = 'scoped memory for tpu_custom_call.1']
    #allocation5 [shape = 'u8[8192]{0}', space=vmem, size = 0x2000, scoped, tag = 'output window, operand 0, single buffered']
    %6 = vsyncpa [#allocation3], 0
    %7 = vsyncpa [#allocation4], 0
    // Predicated region
    $region2: #{tpu_custom_call.1} parent=1 // pred_check
      _
    $region3: #{tpu_custom_call.1} parent=1 // pred_check_branch
      %9 = sbr.rel (0) target = $region5
    $region4: #{tpu_custom_call.1} parent=1 // pred_region
      %s11 = ssub.s32 256, 256
      %12 = vsyncadd [#allocation3], %s11
      %s14 = sshll.u32 [#allocation2], 4
      %s15 = int_to_ptr.vmem [resolvable:$true] %s14
      %17 = dma.hbm_to_vmem [thread:$0]  %s0, 256, %s15, [#allocation3]
    $region5: #{tpu_custom_call.1} parent=1 // pred_fallthru
      _
    // Predicated region
    $region6: #{tpu_custom_call.1} parent=1 // pred_check
      _
    $region7: #{tpu_custom_call.1} parent=1 // pred_check_branch
      %19 = sbr.rel (0) target = $region9
    $region8: #{tpu_custom_call.1} parent=1 // pred_region
      %20 = dma.done [#allocation3], 256
    $region9: #{tpu_custom_call.1} parent=1 // pred_fallthru
      _
    %v21 = vld [vmem:[#allocation2] sm:$0xff]
    %v22 = vld [vmem:[#allocation2 + $0x8] sm:$0xff]
    %23 = vst [vmem:[#allocation5] sm:$0xff] %v21
    %24 = vst [vmem:[#allocation5 + $0x8] sm:$0xff] %v22
    // Predicated region
    $region10: #{tpu_custom_call.1} parent=1 // pred_check
      _
    $region11: #{tpu_custom_call.1} parent=1 // pred_check_branch
      %26 = sbr.rel (0) target = $region13
    $region12: #{tpu_custom_call.1} parent=1 // pred_region
      %s28 = ssub.s32 256, 256
      %29 = vsyncadd [#allocation4], %s28
      %s31 = sshll.u32 [#allocation5], 4
      %s32 = int_to_ptr.vmem [resolvable:$true] %s31
      %34 = dma.vmem_to_hbm [thread:$0]  %s32, 256, %s1, [#allocation4]
    $region13: #{tpu_custom_call.1} parent=1 // pred_fallthru
      _
    // Predicated region
    $region14: #{tpu_custom_call.1} parent=1 // pred_check
      _
    $region15: #{tpu_custom_call.1} parent=1 // pred_check_branch
      %36 = sbr.rel (0) target = $region17
    $region16: #{tpu_custom_call.1} parent=1 // pred_region
      %37 = dma.done [#allocation4], 256
    $region17: #{tpu_custom_call.1} parent=1 // pred_fallthru
      _
    %38 = vsyncpa [#allocation3], 1
    %39 = vsyncpa [#allocation4], 1

</llo_original>
